<compile_context>
chip_gen: v7x
topology: tpu7x:2x2x1
jax: 0.10.0
libtpu: 0.0.40
codegen_flags: <defaults>
</compile_context>

<pallas_src>
import functools

import jax
import jax.numpy as jnp
import numpy as np
from jax import lax
from jax.experimental import pallas as pl
from jax.experimental.pallas import tpu as pltpu


# ------------------------------- kernel -------------------------------------

def amplitude_modulation_kernel(xt_ref, w1_ref, b1_ref, w2_ref, b2_ref,
                                w3_ref, b3_ref, ot_ref, *, out_per_net):
    xt = xt_ref[...].astype(jnp.float32)                     # (D, TM)

    # r = ||x||, y = x / r  -- done via one rsqrt (no divide).
    # TODO(synk): like the PyTorch original, an all-zero row yields NaN (no eps).
    sumsq = jnp.sum(xt * xt, axis=0, keepdims=True)          # (1, TM)
    inv_r = lax.rsqrt(sumsq)                                 # (1, TM)
    r = sumsq * inv_r                                        # == sqrt(sumsq)
    yt = xt * inv_r                                          # (D, TM)  (x2 of MNN)

    # Fused 3-FCNN forward (weights pre-transposed / block-diagonal host-side):
    # 3 lane-dense matmuls instead of 9 tiny ones.
    h = jax.nn.sigmoid(
        jnp.dot(w1_ref[...], yt, preferred_element_type=jnp.float32) + b1_ref[...])
    h = jax.nn.sigmoid(
        jnp.dot(w2_ref[...], h, preferred_element_type=jnp.float32) + b2_ref[...])
    z = jnp.dot(w3_ref[...], h, preferred_element_type=jnp.float32) + b3_ref[...]  # (3O, TM)

    O = out_per_net
    A = 10.0 * jax.nn.sigmoid(jnp.exp(z[0 * O:1 * O, :]))    # from self.w
    B = z[1 * O:2 * O, :]                                    # from self.b
    W = 10.0 * jax.nn.sigmoid(jnp.exp(z[2 * O:3 * O, :]))    # from self.a

    # y1 = sum(W*tanh(A*r + B)) - sum(W*tanh(A*r*0 + B));  A*r*0 + B == B
    k = (jnp.sum(W * jnp.tanh(A * r + B), axis=0, keepdims=True)
         - jnp.sum(W * jnp.tanh(B), axis=0, keepdims=True))  # (1, TM)

    ot_ref[...] = (k * xt).astype(ot_ref.dtype)


# ------------------------------ wrapper --------------------------------------

def _round_up(n, m):
    return ((n + m - 1) // m) * m


def _block_diag(blocks):
    rows = sum(b.shape[0] for b in blocks)
    cols = sum(b.shape[1] for b in blocks)
    out = jnp.zeros((rows, cols), blocks[0].dtype)
    r0 = c0 = 0
    for b in blocks:
        out = out.at[r0:r0 + b.shape[0], c0:c0 + b.shape[1]].set(b)
        r0 += b.shape[0]
        c0 += b.shape[1]
    return out


def pack_params(params):
    """Fuse the 3 stacked FCNNs into transposed / block-diagonal weights."""
    W1, B1, W2, B2, W3, B3 = params   # (3,D,H) (3,1,H) (3,H,H) (3,1,H) (3,H,O) (3,1,O)
    H = W1.shape[2]
    O = W3.shape[2]
    w1t = jnp.concatenate([W1[i].T for i in range(3)], axis=0)             # (3H, D)
    b1 = jnp.concatenate([B1[i].reshape(H, 1) for i in range(3)], axis=0)  # (3H, 1)
    w2t = _block_diag([W2[i].T for i in range(3)])                         # (3H, 3H)
    b2 = jnp.concatenate([B2[i].reshape(H, 1) for i in range(3)], axis=0)  # (3H, 1)
    w3t = _block_diag([W3[i].T for i in range(3)])                         # (3O, 3H)
    b3 = jnp.concatenate([B3[i].reshape(O, 1) for i in range(3)], axis=0)  # (3O, 1)
    return w1t, b1, w2t, b2, w3t, b3


def amplitude_modulation(x_flat, params, *, tile_m=512):
    """x_flat: (N, D). Returns (N, D) = k * x (AmplitudeModulation.forward)."""
    N, D = x_flat.shape
    w1t, b1, w2t, b2, w3t, b3 = pack_params(params)
    H3 = w1t.shape[0]
    O3 = w3t.shape[0]
    O = O3 // 3

    # Sample tile on the lane axis: multiple of 128, clamped so tiny N doesn't
    # force excessive padding; grid via cdiv + wrapper padding (no divisibility
    # requirement on N).
    tile = max(128, min(_round_up(tile_m, 128), _round_up(N, 128)))
    n_tiles = pl.cdiv(N, tile)
    n_pad = n_tiles * tile

    x_t = jnp.transpose(x_flat)                               # (D, N) layout plumbing
    if n_pad != N:
        x_t = jnp.pad(x_t, ((0, 0), (0, n_pad - N)), constant_values=1.0)

    kernel = functools.partial(amplitude_modulation_kernel, out_per_net=O)

    out_t = pl.pallas_call(
        kernel,
        out_shape=jax.ShapeDtypeStruct((D, n_pad), x_flat.dtype),
        grid_spec=pltpu.PrefetchScalarGridSpec(
            num_scalar_prefetch=0,
            grid=(n_tiles,),
            in_specs=[
                pl.BlockSpec((D, tile), lambda i: (0, i)),    # x^T column tile
                pl.BlockSpec((H3, D), lambda i: (0, 0)),      # fused layer-1 W^T
                pl.BlockSpec((H3, 1), lambda i: (0, 0)),      # fused layer-1 bias
                pl.BlockSpec((H3, H3), lambda i: (0, 0)),     # block-diag layer-2 W^T
                pl.BlockSpec((H3, 1), lambda i: (0, 0)),      # fused layer-2 bias
                pl.BlockSpec((O3, H3), lambda i: (0, 0)),     # block-diag layer-3 W^T
                pl.BlockSpec((O3, 1), lambda i: (0, 0)),      # fused layer-3 bias
            ],
            out_specs=pl.BlockSpec((D, tile), lambda i: (0, i)),
        ),
        compiler_params=pltpu.CompilerParams(
            dimension_semantics=("parallel",)),
    )(x_t, w1t, b1, w2t, b2, w3t, b3)

    return jnp.transpose(out_t[:, :N])


# --------------------------- params / reference ------------------------------

def make_params(key, input_dim, hidden_dim_1, hidden_dim_2):
    """Deterministic synthetic parameters for the 3 stacked FCNNs."""
    D, H, O = input_dim, hidden_dim_1, hidden_dim_2
    ks = jax.random.split(key, 6)
    W1 = jax.random.normal(ks[0], (3, D, H), jnp.float32) / np.sqrt(D)
    B1 = jax.random.normal(ks[1], (3, 1, H), jnp.float32) * 0.1
    W2 = jax.random.normal(ks[2], (3, H, H), jnp.float32) / np.sqrt(H)
    B2 = jax.random.normal(ks[3], (3, 1, H), jnp.float32) * 0.1
    W3 = jax.random.normal(ks[4], (3, H, O), jnp.float32) / np.sqrt(H)
    B3 = jax.random.normal(ks[5], (3, 1, O), jnp.float32) * 0.1
    return (W1, B1, W2, B2, W3, B3)


def reference(x_flat, params):
    """Pure-JAX reference of AmplitudeModulation.forward (sample-major, sqrt/div)."""
    W1, B1, W2, B2, W3, B3 = params
    r = jnp.sqrt(jnp.sum(x_flat ** 2, axis=1, keepdims=True))
    y = x_flat / r

    def fcnn(i):
        h = jax.nn.sigmoid(y @ W1[i] + B1[i])
        h = jax.nn.sigmoid(h @ W2[i] + B2[i])
        return h @ W3[i] + B3[i]

    A = 10.0 * jax.nn.sigmoid(jnp.exp(fcnn(0)))
    B = fcnn(1)
    W = 10.0 * jax.nn.sigmoid(jnp.exp(fcnn(2)))
    k = (jnp.sum(W * jnp.tanh(A * r + B), axis=1, keepdims=True)
         - jnp.sum(W * jnp.tanh(B), axis=1, keepdims=True))
    return k * x_flat


# --------------------------------- main ---------------------------------------

if __name__ == "__main__":
    input_dim = 16
    hidden_dim_1 = 32
    hidden_dim_2 = 8

    key = jax.random.PRNGKey(0)
    k_x, k_p, k_x2 = jax.random.split(key, 3)

    # Module flattens arbitrary input to (-1, input_dim); use a small 4-D input.
    x = jax.random.normal(k_x, (2, 4, 16, 16), jnp.float32)
    x_flat = x.reshape(-1, input_dim)                 # (128, 16)

    params = make_params(k_p, input_dim, hidden_dim_1, hidden_dim_2)

    out = jax.block_until_ready(amplitude_modulation(x_flat, params))
    ref = jax.block_until_ready(reference(x_flat, params))
    np.testing.assert_allclose(np.asarray(out), np.asarray(ref),
                               rtol=2e-4, atol=2e-4)

    # Second check: non-multiple-of-128 sample count exercises the cdiv grid,
    # wrapper padding and a multi-step (megacore-shardable) grid.
    x2 = jax.random.normal(k_x2, (1000, input_dim), jnp.float32)
    out2 = jax.block_until_ready(amplitude_modulation(x2, params, tile_m=512))
    ref2 = jax.block_until_ready(reference(x2, params))
    np.testing.assert_allclose(np.asarray(out2), np.asarray(ref2),
                               rtol=2e-4, atol=2e-4)

    print("KERNEL_OK")
</pallas_src>

<mosaic_0001>
module attributes {stable_mosaic.version = 11 : i64} {
  func.func @amplitude_modulation_kernel(%arg0: i32, %arg1: memref<16x128xf32, #tpu.memory_space<vmem>>, %arg2: memref<96x16xf32, #tpu.memory_space<vmem>>, %arg3: memref<96x1xf32, #tpu.memory_space<vmem>>, %arg4: memref<96x96xf32, #tpu.memory_space<vmem>>, %arg5: memref<96x1xf32, #tpu.memory_space<vmem>>, %arg6: memref<24x96xf32, #tpu.memory_space<vmem>>, %arg7: memref<24x1xf32, #tpu.memory_space<vmem>>, %arg8: memref<16x128xf32, #tpu.memory_space<vmem>>) attributes {dimension_semantics = [#tpu.dimension_semantics<parallel>], iteration_bounds = array<i64: 1>, scalar_prefetch = 0 : i64, scratch_operands = 0 : i64, tpu.core_type = #tpu.core_type<tc>, window_params = [{transform_indices = @transform_0, window_bounds = array<i64: 16, 128>}, {pipeline_mode = #tpu.pipeline_mode<synchronous>, transform_indices = @transform_1, window_bounds = array<i64: 96, 16>}, {pipeline_mode = #tpu.pipeline_mode<synchronous>, transform_indices = @transform_2, window_bounds = array<i64: 96, 1>}, {pipeline_mode = #tpu.pipeline_mode<synchronous>, transform_indices = @transform_3, window_bounds = array<i64: 96, 96>}, {pipeline_mode = #tpu.pipeline_mode<synchronous>, transform_indices = @transform_4, window_bounds = array<i64: 96, 1>}, {pipeline_mode = #tpu.pipeline_mode<synchronous>, transform_indices = @transform_5, window_bounds = array<i64: 24, 96>}, {pipeline_mode = #tpu.pipeline_mode<synchronous>, transform_indices = @transform_6, window_bounds = array<i64: 24, 1>}, {transform_indices = @transform_7, window_bounds = array<i64: 16, 128>}]} {
    %c0 = arith.constant 0 : index
    %c0_0 = arith.constant 0 : index
    %0 = vector.load %arg1[%c0, %c0_0] : memref<16x128xf32, #tpu.memory_space<vmem>>, vector<16x128xf32>
    %1 = arith.mulf %0, %0 : vector<16x128xf32>
    %cst = arith.constant dense<0.000000e+00> : vector<128xf32>
    %2 = vector.multi_reduction <add>, %1, %cst [0] : vector<16x128xf32> to vector<128xf32>
    %3 = vector.shape_cast %2 : vector<128xf32> to vector<1x128xf32>
    %4 = math.rsqrt %3 : vector<1x128xf32>
    %5 = arith.mulf %3, %4 : vector<1x128xf32>
    %6 = vector.broadcast %4 : vector<1x128xf32> to vector<16x128xf32>
    %7 = arith.mulf %0, %6 : vector<16x128xf32>
    %c0_1 = arith.constant 0 : index
    %c0_2 = arith.constant 0 : index
    %8 = vector.load %arg2[%c0_1, %c0_2] : memref<96x16xf32, #tpu.memory_space<vmem>>, vector<96x16xf32>
    %cst_3 = arith.constant dense<0.000000e+00> : vector<96x128xf32>
    %9 = tpu.matmul %8, %7, %cst_3 {dimension_numbers = #tpu.dot_dimension_numbers<[1], [0], [0], [1], [0, 0, 1, 1], [], []>} : vector<96x16xf32>, vector<16x128xf32>, vector<96x128xf32> -> vector<96x128xf32>
    %c0_4 = arith.constant 0 : index
    %c0_5 = arith.constant 0 : index
    %10 = vector.load %arg3[%c0_4, %c0_5] : memref<96x1xf32, #tpu.memory_space<vmem>>, vector<96x1xf32>
    %11 = vector.broadcast %10 : vector<96x1xf32> to vector<96x128xf32>
    %12 = arith.addf %9, %11 : vector<96x128xf32>
    %13 = arith.negf %12 : vector<96x128xf32>
    %14 = math.exp %13 : vector<96x128xf32>
    %cst_6 = arith.constant 1.000000e+00 : f32
    %15 = vector.broadcast %cst_6 : f32 to vector<96x128xf32>
    %16 = arith.addf %15, %14 : vector<96x128xf32>
    %17 = arith.divf %15, %16 : vector<96x128xf32>
    %c0_7 = arith.constant 0 : index
    %c0_8 = arith.constant 0 : index
    %18 = vector.load %arg4[%c0_7, %c0_8] : memref<96x96xf32, #tpu.memory_space<vmem>>, vector<96x96xf32>
    %cst_9 = arith.constant dense<0.000000e+00> : vector<96x128xf32>
    %19 = tpu.matmul %18, %17, %cst_9 {dimension_numbers = #tpu.dot_dimension_numbers<[1], [0], [0], [1], [0, 0, 1, 1], [], []>} : vector<96x96xf32>, vector<96x128xf32>, vector<96x128xf32> -> vector<96x128xf32>
    %c0_10 = arith.constant 0 : index
    %c0_11 = arith.constant 0 : index
    %20 = vector.load %arg5[%c0_10, %c0_11] : memref<96x1xf32, #tpu.memory_space<vmem>>, vector<96x1xf32>
    %21 = vector.broadcast %20 : vector<96x1xf32> to vector<96x128xf32>
    %22 = arith.addf %19, %21 : vector<96x128xf32>
    %23 = arith.negf %22 : vector<96x128xf32>
    %24 = math.exp %23 : vector<96x128xf32>
    %cst_12 = arith.constant 1.000000e+00 : f32
    %25 = vector.broadcast %cst_12 : f32 to vector<96x128xf32>
    %26 = arith.addf %25, %24 : vector<96x128xf32>
    %27 = arith.divf %25, %26 : vector<96x128xf32>
    %c0_13 = arith.constant 0 : index
    %c0_14 = arith.constant 0 : index
    %28 = vector.load %arg6[%c0_13, %c0_14] : memref<24x96xf32, #tpu.memory_space<vmem>>, vector<24x96xf32>
    %cst_15 = arith.constant dense<0.000000e+00> : vector<24x128xf32>
    %29 = tpu.matmul %28, %27, %cst_15 {dimension_numbers = #tpu.dot_dimension_numbers<[1], [0], [0], [1], [0, 0, 1, 1], [], []>} : vector<24x96xf32>, vector<96x128xf32>, vector<24x128xf32> -> vector<24x128xf32>
    %c0_16 = arith.constant 0 : index
    %c0_17 = arith.constant 0 : index
    %30 = vector.load %arg7[%c0_16, %c0_17] : memref<24x1xf32, #tpu.memory_space<vmem>>, vector<24x1xf32>
    %31 = vector.broadcast %30 : vector<24x1xf32> to vector<24x128xf32>
    %32 = arith.addf %29, %31 : vector<24x128xf32>
    %33 = vector.extract_strided_slice %32 {offsets = [0, 0], sizes = [8, 128], strides = [1, 1]} : vector<24x128xf32> to vector<8x128xf32>
    %34 = math.exp %33 : vector<8x128xf32>
    %35 = arith.negf %34 : vector<8x128xf32>
    %36 = math.exp %35 : vector<8x128xf32>
    %cst_18 = arith.constant 1.000000e+00 : f32
    %37 = vector.broadcast %cst_18 : f32 to vector<8x128xf32>
    %38 = arith.addf %37, %36 : vector<8x128xf32>
    %39 = arith.divf %37, %38 : vector<8x128xf32>
    %cst_19 = arith.constant 1.000000e+01 : f32
    %40 = vector.broadcast %cst_19 : f32 to vector<8x128xf32>
    %41 = arith.mulf %40, %39 : vector<8x128xf32>
    %42 = vector.extract_strided_slice %32 {offsets = [8, 0], sizes = [8, 128], strides = [1, 1]} : vector<24x128xf32> to vector<8x128xf32>
    %43 = vector.extract_strided_slice %32 {offsets = [16, 0], sizes = [8, 128], strides = [1, 1]} : vector<24x128xf32> to vector<8x128xf32>
    %44 = math.exp %43 : vector<8x128xf32>
    %45 = arith.negf %44 : vector<8x128xf32>
    %46 = math.exp %45 : vector<8x128xf32>
    %cst_20 = arith.constant 1.000000e+00 : f32
    %47 = vector.broadcast %cst_20 : f32 to vector<8x128xf32>
    %48 = arith.addf %47, %46 : vector<8x128xf32>
    %49 = arith.divf %47, %48 : vector<8x128xf32>
    %cst_21 = arith.constant 1.000000e+01 : f32
    %50 = vector.broadcast %cst_21 : f32 to vector<8x128xf32>
    %51 = arith.mulf %50, %49 : vector<8x128xf32>
    %52 = vector.broadcast %5 : vector<1x128xf32> to vector<8x128xf32>
    %53 = arith.mulf %41, %52 : vector<8x128xf32>
    %54 = arith.addf %53, %42 : vector<8x128xf32>
    %55 = math.tanh %54 : vector<8x128xf32>
    %56 = arith.mulf %51, %55 : vector<8x128xf32>
    %cst_22 = arith.constant dense<0.000000e+00> : vector<128xf32>
    %57 = vector.multi_reduction <add>, %56, %cst_22 [0] : vector<8x128xf32> to vector<128xf32>
    %58 = vector.shape_cast %57 : vector<128xf32> to vector<1x128xf32>
    %59 = math.tanh %42 : vector<8x128xf32>
    %60 = arith.mulf %51, %59 : vector<8x128xf32>
    %cst_23 = arith.constant dense<0.000000e+00> : vector<128xf32>
    %61 = vector.multi_reduction <add>, %60, %cst_23 [0] : vector<8x128xf32> to vector<128xf32>
    %62 = vector.shape_cast %61 : vector<128xf32> to vector<1x128xf32>
    %63 = arith.subf %58, %62 : vector<1x128xf32>
    %64 = vector.broadcast %63 : vector<1x128xf32> to vector<16x128xf32>
    %65 = arith.mulf %64, %0 : vector<16x128xf32>
    %c0_24 = arith.constant 0 : index
    %c0_25 = arith.constant 0 : index
    %66 = vector.load %arg8[%c0_24, %c0_25] : memref<16x128xf32, #tpu.memory_space<vmem>>, vector<16x128xf32>
    tpu.vector_store %arg8[%c0_24, %c0_25], %65 {strides = array<i32>} : memref<16x128xf32, #tpu.memory_space<vmem>>, vector<16x128xf32>,
    return
  }
  func.func @transform_0(%arg0: i32) -> (i32, i32) {
    %c0_i32 = arith.constant 0 : i32
    %c0_i32_0 = arith.constant 0 : i32
    return %c0_i32, %arg0 : i32, i32
  }
  func.func @transform_1(%arg0: i32) -> (i32, i32) {
    %c0_i32 = arith.constant 0 : i32
    %c0_i32_0 = arith.constant 0 : i32
    %c0_i32_1 = arith.constant 0 : i32
    return %c0_i32, %c0_i32_0 : i32, i32
  }
  func.func @transform_2(%arg0: i32) -> (i32, i32) {
    %c0_i32 = arith.constant 0 : i32
    %c0_i32_0 = arith.constant 0 : i32
    %c0_i32_1 = arith.constant 0 : i32
    return %c0_i32, %c0_i32_0 : i32, i32
  }
  func.func @transform_3(%arg0: i32) -> (i32, i32) {
    %c0_i32 = arith.constant 0 : i32
    %c0_i32_0 = arith.constant 0 : i32
    %c0_i32_1 = arith.constant 0 : i32
    return %c0_i32, %c0_i32_0 : i32, i32
  }
  func.func @transform_4(%arg0: i32) -> (i32, i32) {
    %c0_i32 = arith.constant 0 : i32
    %c0_i32_0 = arith.constant 0 : i32
    %c0_i32_1 = arith.constant 0 : i32
    return %c0_i32, %c0_i32_0 : i32, i32
  }
  func.func @transform_5(%arg0: i32) -> (i32, i32) {
    %c0_i32 = arith.constant 0 : i32
    %c0_i32_0 = arith.constant 0 : i32
    %c0_i32_1 = arith.constant 0 : i32
    return %c0_i32, %c0_i32_0 : i32, i32
  }
  func.func @transform_6(%arg0: i32) -> (i32, i32) {
    %c0_i32 = arith.constant 0 : i32
    %c0_i32_0 = arith.constant 0 : i32
    %c0_i32_1 = arith.constant 0 : i32
    return %c0_i32, %c0_i32_0 : i32, i32
  }
  func.func @transform_7(%arg0: i32) -> (i32, i32) {
    %c0_i32 = arith.constant 0 : i32
    %c0_i32_0 = arith.constant 0 : i32
    return %c0_i32, %arg0 : i32, i32
  }
}

</mosaic_0001>

<llo_original>
// kernel: tpu_custom_call.1
$region0: #{tpu_custom_call.1}
  #allocation0 [shape = 'u32[]', space=smem, size = 0x4, offset = 0x4, fixed_abs, tag = 'smem constant byte address 0x4 - core index']
  #allocation1 [shape = 'u32[144,128]{1,0:T(1,128)}', space=vmem, size = 0x12000, scoped, tag = 'internal scratch']
  %s0 = inlined_call_operand.vmem [shape: f32[16,128], index: 0, kind: input, shape index: {}]
  %s1 = inlined_call_operand.vmem [shape: f32[96,16], index: 1, kind: input, shape index: {}]
  %s2 = inlined_call_operand.vmem [shape: f32[96,1], index: 2, kind: input, shape index: {}]
  %s3 = inlined_call_operand.vmem [shape: f32[96,96], index: 3, kind: input, shape index: {}]
  %s4 = inlined_call_operand.vmem [shape: f32[96,1], index: 4, kind: input, shape index: {}]
  %s5 = inlined_call_operand.vmem [shape: f32[24,96], index: 5, kind: input, shape index: {}]
  %s6 = inlined_call_operand.vmem [shape: f32[24,1], index: 6, kind: input, shape index: {}]
  %s7 = inlined_call_operand.hbm [shape: f32[16,128], index: 7, kind: output, shape index: {}]
  %s8 = sld [smem:[#allocation0]]
  $region38: #{tpu_custom_call.1} parent=0
    _
  %s10 = ssub.s32 1, %s8
  %s11 = scalar_select 0, %s10, %s8
  $region1: #{tpu_custom_call.1} parent=0
    #allocation2 [shape = 'u8[8192]{0}', space=vmem, size = 0x2000, scoped, tag = 'output window, operand 0, single buffered']
    #allocation3 [shape = 's32[1]{0}', space=sflag, size = 0x4, scoped, tag = 'scoped memory for tpu_custom_call.1']
    %12 = vsyncpa [#allocation3], 0
    // Predicated region
    $region2: #{tpu_custom_call.1} parent=1 // pred_check
      _
    $region3: #{tpu_custom_call.1} parent=1 // pred_check_branch
      %14 = sbr.rel (0) target = $region5
    $region4: #{tpu_custom_call.1} parent=1 // pred_region
      _
    $region5: #{tpu_custom_call.1} parent=1 // pred_fallthru
      _
    // Predicated region
    $region6: #{tpu_custom_call.1} parent=1 // pred_check
      _
    $region7: #{tpu_custom_call.1} parent=1 // pred_check_branch
      %16 = sbr.rel (0) target = $region9
    $region8: #{tpu_custom_call.1} parent=1 // pred_region
      _
    $region9: #{tpu_custom_call.1} parent=1 // pred_fallthru
      _
    // Predicated region
    $region10: #{tpu_custom_call.1} parent=1 // pred_check
      _
    $region11: #{tpu_custom_call.1} parent=1 // pred_check_branch
      %18 = sbr.rel (0) target = $region13
    $region12: #{tpu_custom_call.1} parent=1 // pred_region
      _
    $region13: #{tpu_custom_call.1} parent=1 // pred_fallthru
      _
    // Predicated region
    $region14: #{tpu_custom_call.1} parent=1 // pred_check
      _
    $region15: #{tpu_custom_call.1} parent=1 // pred_check_branch
      %20 = sbr.rel (0) target = $region17
    $region16: #{tpu_custom_call.1} parent=1 // pred_region
      _
    $region17: #{tpu_custom_call.1} parent=1 // pred_fallthru
      _
    // Predicated region
    $region18: #{tpu_custom_call.1} parent=1 // pred_check
      _
    $region19: #{tpu_custom_call.1} parent=1 // pred_check_branch
      %22 = sbr.rel (0) target = $region21
    $region20: #{tpu_custom_call.1} parent=1 // pred_region
      _
    $region21: #{tpu_custom_call.1} parent=1 // pred_fallthru
      _
    // Predicated region
    $region22: #{tpu_custom_call.1} parent=1 // pred_check
      _
    $region23: #{tpu_custom_call.1} parent=1 // pred_check_branch
      %24 = sbr.rel (0) target = $region25
    $region24: #{tpu_custom_call.1} parent=1 // pred_region
      _
    $region25: #{tpu_custom_call.1} parent=1 // pred_fallthru
      _
    // Predicated region
    $region26: #{tpu_custom_call.1} parent=1 // pred_check
      _
    $region27: #{tpu_custom_call.1} parent=1 // pred_check_branch
      %26 = sbr.rel (0) target = $region29
    $region28: #{tpu_custom_call.1} parent=1 // pred_region
      _
    $region29: #{tpu_custom_call.1} parent=1 // pred_fallthru
      _
    %v27 = vld [vmem:[%s0] sm:$0xff]
    %v28 = vld [vmem:[%s0 + $0x8] sm:$0xff]
    %v29 = vmul.f32 %v27, %v27
    %v30 = vmul.f32 %v28, %v28
    %v31 = vadd.f32 %v29, %v30
    %v32 = vrot.slane %v31, 4
    %v33 = vadd.f32 %v31, %v32
    %v34 = vrot.slane %v33, 2
    %v35 = vadd.f32 %v33, %v34
    %v36 = vrot.slane %v35, 1
    %v37 = vadd.f32 %v35, %v36
    %v38 = vrsqrt.pop %v37
    %v39 = vmul.f32 %v37, %v38
    %v40 = vmul.f32 %v27, %v38
    %v41 = vmul.f32 %v28, %v38
    %v42 = vld [vmem:[%s1] sm:$0xff]
    %v43 = vld [vmem:[%s1 + $0x8] sm:$0xff]
    %v44 = vld [vmem:[%s1 + $0x10] sm:$0xff]
    %v45 = vld [vmem:[%s1 + $0x18] sm:$0xff]
    %v46 = vld [vmem:[%s1 + $0x20] sm:$0xff]
    %v47 = vld [vmem:[%s1 + $0x28] sm:$0xff]
    %v48 = vld [vmem:[%s1 + $0x30] sm:$0xff]
    %v49 = vld [vmem:[%s1 + $0x38] sm:$0xff]
    %v50 = vld [vmem:[%s1 + $0x40] sm:$0xff]
    %v51 = vld [vmem:[%s1 + $0x48] sm:$0xff]
    %v52 = vld [vmem:[%s1 + $0x50] sm:$0xff]
    %v53 = vld [vmem:[%s1 + $0x58] sm:$0xff]
    %v54 = vld [vmem:[%s2] sm:$0xff]
    %v55 = vld [vmem:[%s2 + $0x8] sm:$0xff]
    %v56 = vld [vmem:[%s2 + $0x10] sm:$0xff]
    %v57 = vld [vmem:[%s2 + $0x18] sm:$0xff]
    %v58 = vld [vmem:[%s2 + $0x20] sm:$0xff]
    %v59 = vld [vmem:[%s2 + $0x28] sm:$0xff]
    %v60 = vld [vmem:[%s2 + $0x30] sm:$0xff]
    %v61 = vld [vmem:[%s2 + $0x38] sm:$0xff]
    %v62 = vld [vmem:[%s2 + $0x40] sm:$0xff]
    %v63 = vld [vmem:[%s2 + $0x48] sm:$0xff]
    %v64 = vld [vmem:[%s2 + $0x50] sm:$0xff]
    %v65 = vld [vmem:[%s2 + $0x58] sm:$0xff]
    %67 = vset.pattern.permute.xlu0 0
    %68 = vperm.xlu0 %67, %v54
    %v69 = vpop.permute.xlu0 %68
    %72 = vset.pattern.permute.xlu0 0
    %73 = vperm.xlu0 %72, %v55
    %v74 = vpop.permute.xlu0 %73
    %77 = vset.pattern.permute.xlu0 0
    %78 = vperm.xlu0 %77, %v56
    %v79 = vpop.permute.xlu0 %78
    %82 = vset.pattern.permute.xlu0 0
    %83 = vperm.xlu0 %82, %v57
    %v84 = vpop.permute.xlu0 %83
    %87 = vset.pattern.permute.xlu0 0
    %88 = vperm.xlu0 %87, %v58
    %v89 = vpop.permute.xlu0 %88
    %92 = vset.pattern.permute.xlu0 0
    %93 = vperm.xlu0 %92, %v59
    %v94 = vpop.permute.xlu0 %93
    %97 = vset.pattern.permute.xlu0 0
    %98 = vperm.xlu0 %97, %v60
    %v99 = vpop.permute.xlu0 %98
    %102 = vset.pattern.permute.xlu0 0
    %103 = vperm.xlu0 %102, %v61
    %v104 = vpop.permute.xlu0 %103
    %107 = vset.pattern.permute.xlu0 0
    %108 = vperm.xlu0 %107, %v62
    %v109 = vpop.permute.xlu0 %108
    %112 = vset.pattern.permute.xlu0 0
    %113 = vperm.xlu0 %112, %v63
    %v114 = vpop.permute.xlu0 %113
    %117 = vset.pattern.permute.xlu0 0
    %118 = vperm.xlu0 %117, %v64
    %v119 = vpop.permute.xlu0 %118
    %122 = vset.pattern.permute.xlu0 0
    %123 = vperm.xlu0 %122, %v65
    %v124 = vpop.permute.xlu0 %123
    %vm126 = vcmask 130048
    %v128 = vsel %vm126, %v42, 0
    %v131 = vsel %vm126, %v43, 0
    %v134 = vsel %vm126, %v44, 0
    %v137 = vsel %vm126, %v45, 0
    %v140 = vsel %vm126, %v46, 0
    %v143 = vsel %vm126, %v47, 0
    %v146 = vsel %vm126, %v48, 0
    %v149 = vsel %vm126, %v49, 0
    %v152 = vsel %vm126, %v50, 0
    %v155 = vsel %vm126, %v51, 0
    %v158 = vsel %vm126, %v52, 0
    %v161 = vsel %vm126, %v53, 0
    %163 = vmatprep.subr.mxu0 0.0
    %164 = vmatpush1.msra.mxu0 %v40
    %165 = vmatprep.subr.mxu0 0.0
    %166 = vmatpush1.msra.mxu0 %v41
    %167 = vmatprep.subr.mxu0 0.0
    %168 = vmatpush1.msra.mxu0 0.0
    %169 = vmatprep.subr.mxu0 0.0
    %170 = vmatpush1.msra.mxu0 0.0
    %171 = vmatprep.subr.mxu0 0.0
    %172 = vmatpush1.msra.mxu0 0.0
    %173 = vmatprep.subr.mxu0 0.0
    %174 = vmatpush1.msra.mxu0 0.0
    %175 = vmatprep.subr.mxu0 0.0
    %176 = vmatpush1.msra.mxu0 0.0
    %177 = vmatprep.subr.mxu0 0.0
    %178 = vmatpush1.msra.mxu0 0.0
    %179 = vmatprep.subr.mxu0 0.0
    %180 = vmatpush1.msra.mxu0 0.0
    %181 = vmatprep.subr.mxu0 0.0
    %182 = vmatpush1.msra.mxu0 0.0
    %183 = vmatprep.subr.mxu0 0.0
    %184 = vmatpush1.msra.mxu0 0.0
    %185 = vmatprep.subr.mxu0 0.0
    %186 = vmatpush1.msra.mxu0 0.0
    %187 = vmatprep.subr.mxu0 0.0
    %188 = vmatpush1.msra.mxu0 0.0
    %189 = vmatprep.subr.mxu0 0.0
    %190 = vmatpush1.msra.mxu0 0.0
    %191 = vmatprep.subr.mxu0 0.0
    %192 = vmatpush1.msra.mxu0 0.0
    %193 = vmatprep.subr.mxu0 0.0
    %194 = vmatpush1.msra.mxu0 0.0
    %195 = vmatprep.subr.mxu0 0.0
    %196 = vmatpush1.msra.mxu0 0.0
    %197 = vmatprep.subr.mxu0 0.0
    %198 = vmatpush1.msra.mxu0 0.0
    %199 = vmatprep.subr.mxu0 0.0
    %200 = vmatpush1.msra.mxu0 0.0
    %201 = vmatprep.subr.mxu0 0.0
    %202 = vmatpush1.msra.mxu0 0.0
    %203 = vmatprep.subr.mxu0 0.0
    %204 = vmatpush1.msra.mxu0 0.0
    %205 = vmatprep.subr.mxu0 0.0
    %206 = vmatpush1.msra.mxu0 0.0
    %207 = vmatprep.subr.mxu0 0.0
    %208 = vmatpush1.msra.mxu0 0.0
    %209 = vmatprep.subr.mxu0 0.0
    %210 = vmatpush1.msra.mxu0 0.0
    %211 = vmatprep.subr.mxu0 0.0
    %212 = vmatpush1.msra.mxu0 0.0
    %213 = vmatprep.subr.mxu0 0.0
    %214 = vmatpush1.msra.mxu0 0.0
    %215 = vmatprep.subr.mxu0 0.0
    %216 = vmatpush1.msra.mxu0 0.0
    %217 = vmatprep.subr.mxu0 0.0
    %218 = vmatpush1.msra.mxu0 0.0
    %219 = vmatprep.subr.mxu0 0.0
    %220 = vmatpush1.msra.mxu0 0.0
    %221 = vmatprep.subr.mxu0 0.0
    %222 = vmatpush1.msra.mxu0 0.0
    %223 = vmatprep.subr.mxu0 0.0
    %224 = vmatpush1.msra.mxu0 0.0
    %225 = vmatprep.subr.mxu0 0.0
    %226 = vmatpush1.msra.mxu0 0.0
    %227 = vmatprep.mubr.f32.mxu0 0.0
    %228 = vmatmul.mubr.f32.gmra.mrb[0].mxu0 %v128
    %v229 = vpop.f32.mrb[0].mxu0
    %v230 = vadd.f32 %v69, %v229
    %v231 = vpop.f32.mrb[0].mxu0
    %232 = vmatprep.mubr.f32.mxu0 0.0
    %233 = vmatmul.mubr.f32.gmra.mrb[0].mxu0 %v131
    %v234 = vpop.f32.mrb[0].mxu0
    %v235 = vadd.f32 %v74, %v234
    %v236 = vpop.f32.mrb[0].mxu0
    %237 = vmatprep.mubr.f32.mxu0 0.0
    %238 = vmatmul.mubr.f32.gmra.mrb[0].mxu0 %v134
    %v239 = vpop.f32.mrb[0].mxu0
    %v240 = vadd.f32 %v79, %v239
    %v241 = vpop.f32.mrb[0].mxu0
    %242 = vmatprep.mubr.f32.mxu0 0.0
    %243 = vmatmul.mubr.f32.gmra.mrb[0].mxu0 %v137
    %v244 = vpop.f32.mrb[0].mxu0
    %v245 = vadd.f32 %v84, %v244
    %v246 = vpop.f32.mrb[0].mxu0
    %247 = vmatprep.mubr.f32.mxu0 0.0
    %248 = vmatmul.mubr.f32.gmra.mrb[0].mxu0 %v140
    %v249 = vpop.f32.mrb[0].mxu0
    %v250 = vadd.f32 %v89, %v249
    %v251 = vpop.f32.mrb[0].mxu0
    %252 = vmatprep.mubr.f32.mxu0 0.0
    %253 = vmatmul.mubr.f32.gmra.mrb[0].mxu0 %v143
    %v254 = vpop.f32.mrb[0].mxu0
    %v255 = vadd.f32 %v94, %v254
    %v256 = vpop.f32.mrb[0].mxu0
    %257 = vmatprep.mubr.f32.mxu0 0.0
    %258 = vmatmul.mubr.f32.gmra.mrb[0].mxu0 %v146
    %v259 = vpop.f32.mrb[0].mxu0
    %v260 = vadd.f32 %v99, %v259
    %v261 = vpop.f32.mrb[0].mxu0
    %262 = vmatprep.mubr.f32.mxu0 0.0
    %263 = vmatmul.mubr.f32.gmra.mrb[0].mxu0 %v149
    %v264 = vpop.f32.mrb[0].mxu0
    %v265 = vadd.f32 %v104, %v264
    %v266 = vpop.f32.mrb[0].mxu0
    %267 = vmatprep.mubr.f32.mxu0 0.0
    %268 = vmatmul.mubr.f32.gmra.mrb[0].mxu0 %v152
    %v269 = vpop.f32.mrb[0].mxu0
    %v270 = vadd.f32 %v109, %v269
    %v271 = vpop.f32.mrb[0].mxu0
    %272 = vmatprep.mubr.f32.mxu0 0.0
    %273 = vmatmul.mubr.f32.gmra.mrb[0].mxu0 %v155
    %v274 = vpop.f32.mrb[0].mxu0
    %v275 = vadd.f32 %v114, %v274
    %v276 = vpop.f32.mrb[0].mxu0
    %277 = vmatprep.mubr.f32.mxu0 0.0
    %278 = vmatmul.mubr.f32.gmra.mrb[0].mxu0 %v158
    %v279 = vpop.f32.mrb[0].mxu0
    %v280 = vadd.f32 %v119, %v279
    %v281 = vpop.f32.mrb[0].mxu0
    %282 = vmatprep.mubr.f32.mxu0 0.0
    %283 = vmatmul.mubr.f32.gmra.mrb[0].mxu0 %v161
    %v284 = vpop.f32.mrb[0].mxu0
    %v285 = vadd.f32 %v124, %v284
    %v286 = vpop.f32.mrb[0].mxu0
    %287 = vdwg.mxu0
    %v288 = vxor.u32 %v230, 2147483648
    %v289 = vxor.u32 %v235, 2147483648
    %v290 = vxor.u32 %v240, 2147483648
    %v291 = vxor.u32 %v245, 2147483648
    %v292 = vxor.u32 %v250, 2147483648
    %v293 = vxor.u32 %v255, 2147483648
    %v294 = vxor.u32 %v260, 2147483648
    %v295 = vxor.u32 %v265, 2147483648
    %v296 = vxor.u32 %v270, 2147483648
    %v297 = vxor.u32 %v275, 2147483648
    %v298 = vxor.u32 %v280, 2147483648
    %v299 = vxor.u32 %v285, 2147483648
    %v300 = vmul.f32 %v288, 1.442695
    %v301 = vpow.pop %v300
    %v302 = vmul.f32 %v289, 1.442695
    %v303 = vpow.pop %v302
    %v304 = vmul.f32 %v290, 1.442695
    %v305 = vpow.pop %v304
    %v306 = vmul.f32 %v291, 1.442695
    %v307 = vpow.pop %v306
    %v308 = vmul.f32 %v292, 1.442695
    %v309 = vpow.pop %v308
    %v310 = vmul.f32 %v293, 1.442695
    %v311 = vpow.pop %v310
    %v312 = vmul.f32 %v294, 1.442695
    %v313 = vpow.pop %v312
    %v314 = vmul.f32 %v295, 1.442695
    %v315 = vpow.pop %v314
    %v316 = vmul.f32 %v296, 1.442695
    %v317 = vpow.pop %v316
    %v318 = vmul.f32 %v297, 1.442695
    %v319 = vpow.pop %v318
    %v320 = vmul.f32 %v298, 1.442695
    %v321 = vpow.pop %v320
    %v322 = vmul.f32 %v299, 1.442695
    %v323 = vpow.pop %v322
    %v324 = vadd.f32 %v301, 1.0
    %v325 = vadd.f32 %v303, 1.0
    %v326 = vadd.f32 %v305, 1.0
    %v327 = vadd.f32 %v307, 1.0
    %v328 = vadd.f32 %v309, 1.0
    %v329 = vadd.f32 %v311, 1.0
    %v330 = vadd.f32 %v313, 1.0
    %v331 = vadd.f32 %v315, 1.0
    %v332 = vadd.f32 %v317, 1.0
    %v333 = vadd.f32 %v319, 1.0
    %v334 = vadd.f32 %v321, 1.0
    %v335 = vadd.f32 %v323, 1.0
    %v336 = vrcp.pop %v324
    %v337 = vmul.f32 1.0, %v336
    %v338 = vrcp.pop %v325
    %v339 = vmul.f32 1.0, %v338
    %v340 = vrcp.pop %v326
    %v341 = vmul.f32 1.0, %v340
    %v342 = vrcp.pop %v327
    %v343 = vmul.f32 1.0, %v342
    %v344 = vrcp.pop %v328
    %v345 = vmul.f32 1.0, %v344
    %v346 = vrcp.pop %v329
    %v347 = vmul.f32 1.0, %v346
    %v348 = vrcp.pop %v330
    %v349 = vmul.f32 1.0, %v348
    %v350 = vrcp.pop %v331
    %v351 = vmul.f32 1.0, %v350
    %v352 = vrcp.pop %v332
    %v353 = vmul.f32 1.0, %v352
    %v354 = vrcp.pop %v333
    %v355 = vmul.f32 1.0, %v354
    %v356 = vrcp.pop %v334
    %v357 = vmul.f32 1.0, %v356
    %v358 = vrcp.pop %v335
    %v359 = vmul.f32 1.0, %v358
    %v360 = vld [vmem:[%s3] sm:$0xff]
    %v361 = vld [vmem:[%s3 + $0x8] sm:$0xff]
    %v362 = vld [vmem:[%s3 + $0x10] sm:$0xff]
    %v363 = vld [vmem:[%s3 + $0x18] sm:$0xff]
    %v364 = vld [vmem:[%s3 + $0x20] sm:$0xff]
    %v365 = vld [vmem:[%s3 + $0x28] sm:$0xff]
    %v366 = vld [vmem:[%s3 + $0x30] sm:$0xff]
    %v367 = vld [vmem:[%s3 + $0x38] sm:$0xff]
    %v368 = vld [vmem:[%s3 + $0x40] sm:$0xff]
    %v369 = vld [vmem:[%s3 + $0x48] sm:$0xff]
    %v370 = vld [vmem:[%s3 + $0x50] sm:$0xff]
    %v371 = vld [vmem:[%s3 + $0x58] sm:$0xff]
    %v372 = vld [vmem:[%s4] sm:$0xff]
    %v373 = vld [vmem:[%s4 + $0x8] sm:$0xff]
    %v374 = vld [vmem:[%s4 + $0x10] sm:$0xff]
    %v375 = vld [vmem:[%s4 + $0x18] sm:$0xff]
    %v376 = vld [vmem:[%s4 + $0x20] sm:$0xff]
    %v377 = vld [vmem:[%s4 + $0x28] sm:$0xff]
    %v378 = vld [vmem:[%s4 + $0x30] sm:$0xff]
    %v379 = vld [vmem:[%s4 + $0x38] sm:$0xff]
    %v380 = vld [vmem:[%s4 + $0x40] sm:$0xff]
    %v381 = vld [vmem:[%s4 + $0x48] sm:$0xff]
    %v382 = vld [vmem:[%s4 + $0x50] sm:$0xff]
    %v383 = vld [vmem:[%s4 + $0x58] sm:$0xff]
    %385 = vset.pattern.permute.xlu0 0
    %386 = vperm.xlu0 %385, %v372
    %v387 = vpop.permute.xlu0 %386
    %390 = vset.pattern.permute.xlu0 0
    %391 = vperm.xlu0 %390, %v373
    %v392 = vpop.permute.xlu0 %391
    %395 = vset.pattern.permute.xlu0 0
    %396 = vperm.xlu0 %395, %v374
    %v397 = vpop.permute.xlu0 %396
    %400 = vset.pattern.permute.xlu0 0
    %401 = vperm.xlu0 %400, %v375
    %v402 = vpop.permute.xlu0 %401
    %405 = vset.pattern.permute.xlu0 0
    %406 = vperm.xlu0 %405, %v376
    %v407 = vpop.permute.xlu0 %406
    %410 = vset.pattern.permute.xlu0 0
    %411 = vperm.xlu0 %410, %v377
    %v412 = vpop.permute.xlu0 %411
    %415 = vset.pattern.permute.xlu0 0
    %416 = vperm.xlu0 %415, %v378
    %v417 = vpop.permute.xlu0 %416
    %420 = vset.pattern.permute.xlu0 0
    %421 = vperm.xlu0 %420, %v379
    %v422 = vpop.permute.xlu0 %421
    %425 = vset.pattern.permute.xlu0 0
    %426 = vperm.xlu0 %425, %v380
    %v427 = vpop.permute.xlu0 %426
    %430 = vset.pattern.permute.xlu0 0
    %431 = vperm.xlu0 %430, %v381
    %v432 = vpop.permute.xlu0 %431
    %435 = vset.pattern.permute.xlu0 0
    %436 = vperm.xlu0 %435, %v382
    %v437 = vpop.permute.xlu0 %436
    %440 = vset.pattern.permute.xlu0 0
    %441 = vperm.xlu0 %440, %v383
    %v442 = vpop.permute.xlu0 %441
    %vm444 = vcmask 785408
    %v446 = vsel %vm444, %v360, 0
    %v449 = vsel %vm444, %v361, 0
    %v452 = vsel %vm444, %v362, 0
    %v455 = vsel %vm444, %v363, 0
    %v458 = vsel %vm444, %v364, 0
    %v461 = vsel %vm444, %v365, 0
    %v464 = vsel %vm444, %v366, 0
    %v467 = vsel %vm444, %v367, 0
    %v470 = vsel %vm444, %v368, 0
    %v473 = vsel %vm444, %v369, 0
    %v476 = vsel %vm444, %v370, 0
    %v479 = vsel %vm444, %v371, 0
    %481 = vmatprep.subr.mxu0 0.0
    %482 = vmatpush1.msra.mxu0 %v337
    %483 = vmatprep.subr.mxu0 0.0
    %484 = vmatpush1.msra.mxu0 %v339
    %485 = vmatprep.subr.mxu0 0.0
    %486 = vmatpush1.msra.mxu0 %v341
    %487 = vmatprep.subr.mxu0 0.0
    %488 = vmatpush1.msra.mxu0 %v343
    %489 = vmatprep.subr.mxu0 0.0
    %490 = vmatpush1.msra.mxu0 %v345
    %491 = vmatprep.subr.mxu0 0.0
    %492 = vmatpush1.msra.mxu0 %v347
    %493 = vmatprep.subr.mxu0 0.0
    %494 = vmatpush1.msra.mxu0 %v349
    %495 = vmatprep.subr.mxu0 0.0
    %496 = vmatpush1.msra.mxu0 %v351
    %497 = vmatprep.subr.mxu0 0.0
    %498 = vmatpush1.msra.mxu0 %v353
    %499 = vmatprep.subr.mxu0 0.0
    %500 = vmatpush1.msra.mxu0 %v355
    %501 = vmatprep.subr.mxu0 0.0
    %502 = vmatpush1.msra.mxu0 %v357
    %503 = vmatprep.subr.mxu0 0.0
    %504 = vmatpush1.msra.mxu0 %v359
    %505 = vmatprep.subr.mxu0 0.0
    %506 = vmatpush1.msra.mxu0 0.0
    %507 = vmatprep.subr.mxu0 0.0
    %508 = vmatpush1.msra.mxu0 0.0
    %509 = vmatprep.subr.mxu0 0.0
    %510 = vmatpush1.msra.mxu0 0.0
    %511 = vmatprep.subr.mxu0 0.0
    %512 = vmatpush1.msra.mxu0 0.0
    %513 = vmatprep.subr.mxu0 0.0
    %514 = vmatpush1.msra.mxu0 0.0
    %515 = vmatprep.subr.mxu0 0.0
    %516 = vmatpush1.msra.mxu0 0.0
    %517 = vmatprep.subr.mxu0 0.0
    %518 = vmatpush1.msra.mxu0 0.0
    %519 = vmatprep.subr.mxu0 0.0
    %520 = vmatpush1.msra.mxu0 0.0
    %521 = vmatprep.subr.mxu0 0.0
    %522 = vmatpush1.msra.mxu0 0.0
    %523 = vmatprep.subr.mxu0 0.0
    %524 = vmatpush1.msra.mxu0 0.0
    %525 = vmatprep.subr.mxu0 0.0
    %526 = vmatpush1.msra.mxu0 0.0
    %527 = vmatprep.subr.mxu0 0.0
    %528 = vmatpush1.msra.mxu0 0.0
    %529 = vmatprep.subr.mxu0 0.0
    %530 = vmatpush1.msra.mxu0 0.0
    %531 = vmatprep.subr.mxu0 0.0
    %532 = vmatpush1.msra.mxu0 0.0
    %533 = vmatprep.subr.mxu0 0.0
    %534 = vmatpush1.msra.mxu0 0.0
    %535 = vmatprep.subr.mxu0 0.0
    %536 = vmatpush1.msra.mxu0 0.0
    %537 = vmatprep.subr.mxu0 0.0
    %538 = vmatpush1.msra.mxu0 0.0
    %539 = vmatprep.subr.mxu0 0.0
    %540 = vmatpush1.msra.mxu0 0.0
    %541 = vmatprep.subr.mxu0 0.0
    %542 = vmatpush1.msra.mxu0 0.0
    %543 = vmatprep.subr.mxu0 0.0
    %544 = vmatpush1.msra.mxu0 0.0
    %545 = vmatprep.mubr.f32.mxu0 0.0
    %546 = vmatmul.mubr.f32.gmra.mrb[0].mxu0 %v446
    %v547 = vpop.f32.mrb[0].mxu0
    %v548 = vadd.f32 %v387, %v547
    %v549 = vpop.f32.mrb[0].mxu0
    %550 = vmatprep.mubr.f32.mxu0 0.0
    %551 = vmatmul.mubr.f32.gmra.mrb[0].mxu0 %v449
    %v552 = vpop.f32.mrb[0].mxu0
    %v553 = vadd.f32 %v392, %v552
    %v554 = vpop.f32.mrb[0].mxu0
    %555 = vmatprep.mubr.f32.mxu0 0.0
    %556 = vmatmul.mubr.f32.gmra.mrb[0].mxu0 %v452
    %v557 = vpop.f32.mrb[0].mxu0
    %v558 = vadd.f32 %v397, %v557
    %v559 = vpop.f32.mrb[0].mxu0
    %560 = vmatprep.mubr.f32.mxu0 0.0
    %561 = vmatmul.mubr.f32.gmra.mrb[0].mxu0 %v455
    %v562 = vpop.f32.mrb[0].mxu0
    %v563 = vadd.f32 %v402, %v562
    %v564 = vpop.f32.mrb[0].mxu0
    %565 = vmatprep.mubr.f32.mxu0 0.0
    %566 = vmatmul.mubr.f32.gmra.mrb[0].mxu0 %v458
    %v567 = vpop.f32.mrb[0].mxu0
    %v568 = vadd.f32 %v407, %v567
    %v569 = vpop.f32.mrb[0].mxu0
    %570 = vmatprep.mubr.f32.mxu0 0.0
    %571 = vmatmul.mubr.f32.gmra.mrb[0].mxu0 %v461
    %v572 = vpop.f32.mrb[0].mxu0
    %v573 = vadd.f32 %v412, %v572
    %v574 = vpop.f32.mrb[0].mxu0
    %575 = vmatprep.mubr.f32.mxu0 0.0
    %576 = vmatmul.mubr.f32.gmra.mrb[0].mxu0 %v464
    %v577 = vpop.f32.mrb[0].mxu0
    %v578 = vadd.f32 %v417, %v577
    %v579 = vpop.f32.mrb[0].mxu0
    %580 = vmatprep.mubr.f32.mxu0 0.0
    %581 = vmatmul.mubr.f32.gmra.mrb[0].mxu0 %v467
    %v582 = vpop.f32.mrb[0].mxu0
    %v583 = vadd.f32 %v422, %v582
    %v584 = vpop.f32.mrb[0].mxu0
    %585 = vmatprep.mubr.f32.mxu0 0.0
    %586 = vmatmul.mubr.f32.gmra.mrb[0].mxu0 %v470
    %v587 = vpop.f32.mrb[0].mxu0
    %v588 = vadd.f32 %v427, %v587
    %v589 = vpop.f32.mrb[0].mxu0
    %590 = vmatprep.mubr.f32.mxu0 0.0
    %591 = vmatmul.mubr.f32.gmra.mrb[0].mxu0 %v473
    %v592 = vpop.f32.mrb[0].mxu0
    %v593 = vadd.f32 %v432, %v592
    %v594 = vpop.f32.mrb[0].mxu0
    %595 = vmatprep.mubr.f32.mxu0 0.0
    %596 = vmatmul.mubr.f32.gmra.mrb[0].mxu0 %v476
    %v597 = vpop.f32.mrb[0].mxu0
    %v598 = vadd.f32 %v437, %v597
    %v599 = vpop.f32.mrb[0].mxu0
    %600 = vmatprep.mubr.f32.mxu0 0.0
    %601 = vmatmul.mubr.f32.gmra.mrb[0].mxu0 %v479
    %v602 = vpop.f32.mrb[0].mxu0
    %v603 = vadd.f32 %v442, %v602
    %v604 = vpop.f32.mrb[0].mxu0
    %605 = vdwg.mxu0
    %v606 = vxor.u32 %v548, 2147483648
    %v607 = vxor.u32 %v553, 2147483648
    %v608 = vxor.u32 %v558, 2147483648
    %v609 = vxor.u32 %v563, 2147483648
    %v610 = vxor.u32 %v568, 2147483648
    %v611 = vxor.u32 %v573, 2147483648
    %v612 = vxor.u32 %v578, 2147483648
    %v613 = vxor.u32 %v583, 2147483648
    %v614 = vxor.u32 %v588, 2147483648
    %v615 = vxor.u32 %v593, 2147483648
    %v616 = vxor.u32 %v598, 2147483648
    %v617 = vxor.u32 %v603, 2147483648
    %v618 = vmul.f32 %v606, 1.442695
    %v619 = vpow.pop %v618
    %v620 = vmul.f32 %v607, 1.442695
    %v621 = vpow.pop %v620
    %v622 = vmul.f32 %v608, 1.442695
    %v623 = vpow.pop %v622
    %v624 = vmul.f32 %v609, 1.442695
    %v625 = vpow.pop %v624
    %v626 = vmul.f32 %v610, 1.442695
    %v627 = vpow.pop %v626
    %v628 = vmul.f32 %v611, 1.442695
    %v629 = vpow.pop %v628
    %v630 = vmul.f32 %v612, 1.442695
    %v631 = vpow.pop %v630
    %v632 = vmul.f32 %v613, 1.442695
    %v633 = vpow.pop %v632
    %v634 = vmul.f32 %v614, 1.442695
    %v635 = vpow.pop %v634
    %v636 = vmul.f32 %v615, 1.442695
    %v637 = vpow.pop %v636
    %v638 = vmul.f32 %v616, 1.442695
    %v639 = vpow.pop %v638
    %v640 = vmul.f32 %v617, 1.442695
    %v641 = vpow.pop %v640
    %v642 = vadd.f32 %v619, 1.0
    %v643 = vadd.f32 %v621, 1.0
    %v644 = vadd.f32 %v623, 1.0
    %v645 = vadd.f32 %v625, 1.0
    %v646 = vadd.f32 %v627, 1.0
    %v647 = vadd.f32 %v629, 1.0
    %v648 = vadd.f32 %v631, 1.0
    %v649 = vadd.f32 %v633, 1.0
    %v650 = vadd.f32 %v635, 1.0
    %v651 = vadd.f32 %v637, 1.0
    %v652 = vadd.f32 %v639, 1.0
    %v653 = vadd.f32 %v641, 1.0
    %v654 = vrcp.pop %v642
    %v655 = vmul.f32 1.0, %v654
    %v656 = vrcp.pop %v643
    %v657 = vmul.f32 1.0, %v656
    %v658 = vrcp.pop %v644
    %v659 = vmul.f32 1.0, %v658
    %v660 = vrcp.pop %v645
    %v661 = vmul.f32 1.0, %v660
    %v662 = vrcp.pop %v646
    %v663 = vmul.f32 1.0, %v662
    %v664 = vrcp.pop %v647
    %v665 = vmul.f32 1.0, %v664
    %v666 = vrcp.pop %v648
    %v667 = vmul.f32 1.0, %v666
    %v668 = vrcp.pop %v649
    %v669 = vmul.f32 1.0, %v668
    %v670 = vrcp.pop %v650
    %v671 = vmul.f32 1.0, %v670
    %v672 = vrcp.pop %v651
    %v673 = vmul.f32 1.0, %v672
    %v674 = vrcp.pop %v652
    %v675 = vmul.f32 1.0, %v674
    %v676 = vrcp.pop %v653
    %v677 = vmul.f32 1.0, %v676
    %v678 = vld [vmem:[%s5] sm:$0xff]
    %v679 = vld [vmem:[%s5 + $0x8] sm:$0xff]
    %v680 = vld [vmem:[%s5 + $0x10] sm:$0xff]
    %v681 = vld [vmem:[%s6] sm:$0xff]
    %v682 = vld [vmem:[%s6 + $0x8] sm:$0xff]
    %v683 = vld [vmem:[%s6 + $0x10] sm:$0xff]
    %685 = vset.pattern.permute.xlu0 0
    %686 = vperm.xlu0 %685, %v681
    %v687 = vpop.permute.xlu0 %686
    %690 = vset.pattern.permute.xlu0 0
    %691 = vperm.xlu0 %690, %v682
    %v692 = vpop.permute.xlu0 %691
    %695 = vset.pattern.permute.xlu0 0
    %696 = vperm.xlu0 %695, %v683
    %v697 = vpop.permute.xlu0 %696
    %v700 = vsel %vm444, %v678, 0
    %v703 = vsel %vm444, %v679, 0
    %v706 = vsel %vm444, %v680, 0
    %708 = vmatprep.subr.mxu0 0.0
    %709 = vmatpush1.msra.mxu0 %v655
    %710 = vmatprep.subr.mxu0 0.0
    %711 = vmatpush1.msra.mxu0 %v657
    %712 = vmatprep.subr.mxu0 0.0
    %713 = vmatpush1.msra.mxu0 %v659
    %714 = vmatprep.subr.mxu0 0.0
    %715 = vmatpush1.msra.mxu0 %v661
    %716 = vmatprep.subr.mxu0 0.0
    %717 = vmatpush1.msra.mxu0 %v663
    %718 = vmatprep.subr.mxu0 0.0
    %719 = vmatpush1.msra.mxu0 %v665
    %720 = vmatprep.subr.mxu0 0.0
    %721 = vmatpush1.msra.mxu0 %v667
    %722 = vmatprep.subr.mxu0 0.0
    %723 = vmatpush1.msra.mxu0 %v669
    %724 = vmatprep.subr.mxu0 0.0
    %725 = vmatpush1.msra.mxu0 %v671
    %726 = vmatprep.subr.mxu0 0.0
    %727 = vmatpush1.msra.mxu0 %v673
    %728 = vmatprep.subr.mxu0 0.0
    %729 = vmatpush1.msra.mxu0 %v675
    %730 = vmatprep.subr.mxu0 0.0
    %731 = vmatpush1.msra.mxu0 %v677
    %732 = vmatprep.subr.mxu0 0.0
    %733 = vmatpush1.msra.mxu0 0.0
    %734 = vmatprep.subr.mxu0 0.0
    %735 = vmatpush1.msra.mxu0 0.0
    %736 = vmatprep.subr.mxu0 0.0
    %737 = vmatpush1.msra.mxu0 0.0
    %738 = vmatprep.subr.mxu0 0.0
    %739 = vmatpush1.msra.mxu0 0.0
    %740 = vmatprep.subr.mxu0 0.0
    %741 = vmatpush1.msra.mxu0 0.0
    %742 = vmatprep.subr.mxu0 0.0
    %743 = vmatpush1.msra.mxu0 0.0
    %744 = vmatprep.subr.mxu0 0.0
    %745 = vmatpush1.msra.mxu0 0.0
    %746 = vmatprep.subr.mxu0 0.0
    %747 = vmatpush1.msra.mxu0 0.0
    %748 = vmatprep.subr.mxu0 0.0
    %749 = vmatpush1.msra.mxu0 0.0
    %750 = vmatprep.subr.mxu0 0.0
    %751 = vmatpush1.msra.mxu0 0.0
    %752 = vmatprep.subr.mxu0 0.0
    %753 = vmatpush1.msra.mxu0 0.0
    %754 = vmatprep.subr.mxu0 0.0
    %755 = vmatpush1.msra.mxu0 0.0
    %756 = vmatprep.subr.mxu0 0.0
    %757 = vmatpush1.msra.mxu0 0.0
    %758 = vmatprep.subr.mxu0 0.0
    %759 = vmatpush1.msra.mxu0 0.0
    %760 = vmatprep.subr.mxu0 0.0
    %761 = vmatpush1.msra.mxu0 0.0
    %762 = vmatprep.subr.mxu0 0.0
    %763 = vmatpush1.msra.mxu0 0.0
    %764 = vmatprep.subr.mxu0 0.0
    %765 = vmatpush1.msra.mxu0 0.0
    %766 = vmatprep.subr.mxu0 0.0
    %767 = vmatpush1.msra.mxu0 0.0
    %768 = vmatprep.subr.mxu0 0.0
    %769 = vmatpush1.msra.mxu0 0.0
    %770 = vmatprep.subr.mxu0 0.0
    %771 = vmatpush1.msra.mxu0 0.0
    %772 = vmatprep.mubr.f32.mxu0 0.0
    %773 = vmatmul.mubr.f32.gmra.mrb[0].mxu0 %v700
    %v774 = vpop.f32.mrb[0].mxu0
    %v775 = vadd.f32 %v687, %v774
    %v776 = vpop.f32.mrb[0].mxu0
    %777 = vmatprep.mubr.f32.mxu0 0.0
    %778 = vmatmul.mubr.f32.gmra.mrb[0].mxu0 %v703
    %v779 = vpop.f32.mrb[0].mxu0
    %v780 = vadd.f32 %v692, %v779
    %v781 = vpop.f32.mrb[0].mxu0
    %782 = vmatprep.mubr.f32.mxu0 0.0
    %783 = vmatmul.mubr.f32.gmra.mrb[0].mxu0 %v706
    %v784 = vpop.f32.mrb[0].mxu0
    %v785 = vadd.f32 %v697, %v784
    %v786 = vpop.f32.mrb[0].mxu0
    %787 = vdwg.mxu0
    %v788 = vmul.f32 %v775, 1.442695
    %v789 = vpow.pop %v788
    %v790 = vxor.u32 %v789, 2147483648
    %v791 = vmul.f32 %v790, 1.442695
    %v792 = vpow.pop %v791
    %v793 = vadd.f32 %v792, 1.0
    %v794 = vrcp.pop %v793
    %v795 = vmul.f32 1.0, %v794
    %v796 = vmul.f32 %v795, 10.0
    %v797 = vmul.f32 %v785, 1.442695
    %v798 = vpow.pop %v797
    %v799 = vxor.u32 %v798, 2147483648
    %v800 = vmul.f32 %v799, 1.442695
    %v801 = vpow.pop %v800
    %v802 = vadd.f32 %v801, 1.0
    %v803 = vrcp.pop %v802
    %v804 = vmul.f32 1.0, %v803
    %v805 = vmul.f32 %v804, 10.0
    %v806 = vmul.f32 %v796, %v39
    %v807 = vadd.f32 %v806, %v780
    %v808 = vtanh.pop %v807
    %v809 = vmul.f32 %v805, %v808
    %v810 = vrot.slane %v809, 4
    %v811 = vadd.f32 %v809, %v810
    %v812 = vrot.slane %v811, 2
    %v813 = vadd.f32 %v811, %v812
    %v814 = vrot.slane %v813, 1
    %v815 = vadd.f32 %v813, %v814
    %v816 = vtanh.pop %v780
    %v817 = vmul.f32 %v805, %v816
    %v818 = vrot.slane %v817, 4
    %v819 = vadd.f32 %v817, %v818
    %v820 = vrot.slane %v819, 2
    %v821 = vadd.f32 %v819, %v820
    %v822 = vrot.slane %v821, 1
    %v823 = vadd.f32 %v821, %v822
    %v824 = vsub.f32 %v815, %v823
    %v825 = vmul.f32 %v824, %v27
    %v826 = vmul.f32 %v824, %v28
    %827 = vst [vmem:[#allocation2] sm:$0xff] %v825
    %828 = vst [vmem:[#allocation2 + $0x8] sm:$0xff] %v826
    // Predicated region
    $region30: #{tpu_custom_call.1} parent=1 // pred_check
      _
    $region31: #{tpu_custom_call.1} parent=1 // pred_check_branch
      %830 = sbr.rel (0) target = $region33
    $region32: #{tpu_custom_call.1} parent=1 // pred_region
      %s832 = ssub.s32 256, 256
      %833 = vsyncadd [#allocation3], %s832
      %s834 = sshll.u32 [#allocation2], 4
      %s835 = int_to_ptr.vmem [resolvable:$true] %s834
      %840 = dma.vmem_to_hbm [thread:$0]  %s835, 256, %s7, [#allocation3], 128, 128, 8
    $region33: #{tpu_custom_call.1} parent=1 // pred_fallthru
      _
    // Predicated region
    $region34: #{tpu_custom_call.1} parent=1 // pred_check
      _
    $region35: #{tpu_custom_call.1} parent=1 // pred_check_branch
      %842 = sbr.rel (0) target = $region37
    $region36: #{tpu_custom_call.1} parent=1 // pred_region
      %843 = dma.done [#allocation3], 256
    $region37: #{tpu_custom_call.1} parent=1 // pred_fallthru
      _
    %844 = vsyncpa [#allocation3], 1

</llo_original>
